<compile_context>
chip_gen: v6e
topology: v6e:2x2x1
jax: 0.10.0
libtpu: 0.0.40
codegen_flags: <defaults>
</compile_context>

<pallas_src>
import functools
import math

import jax
import jax.numpy as jnp
from jax.experimental import pallas as pl
from jax.experimental.pallas import tpu as pltpu


def _iqtanh_f32(x, *, scale_x, l_scale, qmin, qmax, skip_clip):
    """Quant -> Q11 shift -> fixed-point tanh -> Q7 requant -> dequant (f32 math)."""
    # Input quantization to data_bits codes; linger fixed-point rounding floor(v+0.5).
    q = jnp.floor(x * scale_x + 0.5)
    if not skip_clip:
        q = jnp.clip(q, qmin, qmax)

    if l_scale > 0:
        # Exact fusion: q * 2^l_scale / 2048 == q / scale_x.
        arg = q * (1.0 / scale_x)
    else:
        # scale_x >= 2^11: reference rounds the shifted code to Q11 first.
        x_int = jnp.floor(q * float(2.0 ** l_scale) + 0.5)
        arg = x_int * (1.0 / 2048.0)

    # TODO(synk): lingerext.luna_iqtanh is a hardware fixed-point LUT tanh (Q11 in,
    # Q7 int8 out); approximated here with float tanh + Q7 floor(+0.5)/saturate,
    # which can differ from the table by ~1 Q7 LSB near ties/saturation.
    y_int = jnp.clip(jnp.floor(jnp.tanh(arg) * 128.0 + 0.5), -128.0, 127.0)
    return y_int * (1.0 / 128.0)


def _iqtanh_kernel(x_ref, o_ref, **params):
    x = x_ref[...].astype(jnp.float32)
    o_ref[...] = _iqtanh_f32(x, **params).astype(o_ref.dtype)


_SUBLANE_MULT = {4: 8, 2: 16, 1: 32}


def iq_tanh_layer(
    x,
    scale_x,
    data_bits=16,
    *,
    max_block_bytes=1 << 20,     # ~1 MiB tiles: ~85% of HBM roofline, 4 MiB double-buffered VMEM
    min_pipeline_blocks=4,       # >=4 grid steps: DMA/compute overlap + both v7x TensorCores
    out_dtype=None,              # e.g. jnp.bfloat16 (Q7 codes k/128 are exact in bf16)
    donate_input=False,          # alias output onto x's HBM buffer when the caller donates x
):
    """Pallas implementation of iqTanhLayer.forward (luna_quant, eval mode).

    Returns (y, scale_o, running_o): y has x's shape (dtype = out_dtype or x.dtype),
    scale_o = 128.0, running_o = 1.0 (the updated layer buffers).
    """
    orig_shape = x.shape
    in_dtype = jnp.dtype(x.dtype)
    out_dt = jnp.dtype(out_dtype) if out_dtype is not None else in_dtype

    scale_x = float(scale_x)
    log2s = math.log2(scale_x)
    assert abs(log2s - round(log2s)) < 1e-9, "QValue contract: scale_x must be a power of 2"
    l_scale = 11 - int(round(log2s))
    qmax = float(2 ** (data_bits - 1) - 1)
    qmin = -float(2 ** (data_bits - 1))
    # If the largest representable code already lands deep in tanh saturation
    # (|arg| >= 4 -> Q7 result pinned at 127 / -128), clipping the input code
    # cannot change the output; drop the 2 VALU ops/elem statically.
    skip_clip = (qmax / scale_x) >= 4.0 and (-qmin / scale_x) >= 4.0

    params = dict(scale_x=scale_x, l_scale=l_scale, qmin=qmin, qmax=qmax,
                  skip_clip=skip_clip)

    flat = x.reshape(-1)
    n = flat.shape[0]

    def run_slab(flat_part, n_part):
        # Widest lane slab that divides n_part (lane-dense, unmasked-vst output).
        lanes = 128
        for cand in (1024, 512, 256):
            if n_part % cand == 0:
                lanes = cand
                break
        rows = n_part // lanes
        slab = flat_part.reshape(rows, lanes)

        # Dtype-aware sublane packing requirement (narrowest of in/out dtype).
        sublane_mult = _SUBLANE_MULT.get(min(in_dtype.itemsize, out_dt.itemsize), 8)
        # Tile sized by the widest element actually streamed.
        row_bytes = lanes * max(in_dtype.itemsize, out_dt.itemsize)
        max_tile_rows = max(sublane_mult,
                            (max_block_bytes // row_bytes) // sublane_mult * sublane_mult)

        if rows <= 2 * sublane_mult:
            tile_rows = rows                                  # tiny: one full-dims block
        else:
            # Aim for >= min_pipeline_blocks grid steps, capped at ~1 MiB per tile.
            want = max(sublane_mult,
                       (rows // min_pipeline_blocks) // sublane_mult * sublane_mult)
            tile_rows = min(max_tile_rows, want)
        grid = (pl.cdiv(rows, tile_rows),)                    # last block may be partial

        call_kwargs = {}
        if donate_input and in_dtype == out_dt:
            call_kwargs["input_output_aliases"] = {0: 0}

        out = pl.pallas_call(
            functools.partial(_iqtanh_kernel, **params),
            out_shape=jax.ShapeDtypeStruct((rows, lanes), out_dt),
            grid_spec=pltpu.PrefetchScalarGridSpec(
                num_scalar_prefetch=0,
                grid=grid,
                in_specs=[pl.BlockSpec((tile_rows, lanes), lambda i: (i, 0))],
                out_specs=pl.BlockSpec((tile_rows, lanes), lambda i: (i, 0)),
            ),
            compiler_params=pltpu.CompilerParams(
                dimension_semantics=("parallel",),            # shards blocks across v7x's 2 TCs
            ),
            **call_kwargs,
        )(slab)
        return out.reshape(-1)

    if n % 128 == 0:
        flat_out = run_slab(flat, n)
    else:
        # No full-tensor pad/slice: kernel on the 128-aligned prefix, plain jnp on
        # the (<128-element) tail.
        # TODO(synk): a masked last partial block (pltpu.store with a lane mask)
        # would make the unaligned path fully zero-copy as well.
        n_main = (n // 128) * 128
        tail_out = _iqtanh_f32(flat[n_main:].astype(jnp.float32), **params).astype(out_dt)
        if n_main == 0:
            flat_out = tail_out
        else:
            flat_out = jnp.concatenate([run_slab(flat[:n_main], n_main), tail_out])

    y = flat_out.reshape(orig_shape)

    # Updated layer buffers (luna_quant path fixes these values).
    scale_o = jnp.float32(128.0)
    running_o = jnp.float32(1.0)
    return y, scale_o, running_o


def _reference(x, scale_x, data_bits=16):
    """Pure-jnp reference of the luna_quant tanh path (same rounding convention)."""
    qmax = float(2 ** (data_bits - 1) - 1)
    qmin = -float(2 ** (data_bits - 1))
    xf = x.astype(jnp.float32)
    q = jnp.clip(jnp.floor(xf * scale_x + 0.5), qmin, qmax)
    y = jnp.clip(jnp.floor(jnp.tanh(q / scale_x) * 128.0 + 0.5), -128.0, 127.0) / 128.0
    return y


if __name__ == "__main__":
    key = jax.random.PRNGKey(0)
    k0, k1 = jax.random.split(key)

    # Small NCHW input, as an IQTensor would carry: float values with a
    # power-of-2 scale (scale_x = 2^8) and data_bits = 16 after Requant.
    x = jax.random.normal(k0, (2, 4, 16, 16), dtype=jnp.float32)
    scale_x = 256.0  # 2^8

    y, scale_o, running_o = iq_tanh_layer(x, scale_x, data_bits=16)
    jax.block_until_ready(y)

    ref = _reference(x, scale_x)
    assert y.shape == x.shape and y.dtype == x.dtype
    assert float(jnp.max(jnp.abs(y - ref))) <= 1.0 / 128.0 + 1e-6
    assert float(scale_o) == 128.0 and float(running_o) == 1.0

    # bf16 input (exercises the 16-row sublane-packing path through the kernel).
    xb = jax.random.normal(k1, (2, 4, 16, 20), dtype=jnp.bfloat16)
    yb, so_b, ro_b = iq_tanh_layer(xb, scale_x, data_bits=16)
    jax.block_until_ready(yb)
    refb = _reference(xb, scale_x).astype(jnp.bfloat16)
    assert yb.shape == xb.shape and yb.dtype == xb.dtype
    assert float(jnp.max(jnp.abs(yb.astype(jnp.float32) - refb.astype(jnp.float32)))) \
        <= 1.0 / 128.0 + 1e-6
    assert float(so_b) == 128.0 and float(ro_b) == 1.0

    # Lane-unaligned shape (exercises the prefix + plain-jnp tail path).
    xu = jax.random.normal(k0, (3, 5, 7), dtype=jnp.float32)
    yu, _, _ = iq_tanh_layer(xu, scale_x, data_bits=16)
    jax.block_until_ready(yu)
    refu = _reference(xu, scale_x)
    assert yu.shape == xu.shape
    assert float(jnp.max(jnp.abs(yu - refu))) <= 1.0 / 128.0 + 1e-6

    print("KERNEL_OK")
</pallas_src>

<mosaic_0001>
module attributes {stable_mosaic.version = 11 : i64} {
  func.func @_iqtanh_kernel(%arg0: i32, %arg1: memref<2x1024xf32, #tpu.memory_space<vmem>>, %arg2: memref<2x1024xf32, #tpu.memory_space<vmem>>) attributes {dimension_semantics = [#tpu.dimension_semantics<parallel>], iteration_bounds = array<i64: 1>, scalar_prefetch = 0 : i64, scratch_operands = 0 : i64, tpu.core_type = #tpu.core_type<tc>, window_params = [{transform_indices = @transform_0, window_bounds = array<i64: 2, 1024>}, {transform_indices = @transform_1, window_bounds = array<i64: 2, 1024>}]} {
    %c0 = arith.constant 0 : index
    %c0_0 = arith.constant 0 : index
    %0 = vector.load %arg1[%c0, %c0_0] : memref<2x1024xf32, #tpu.memory_space<vmem>>, vector<2x1024xf32>
    %cst = arith.constant 2.560000e+02 : f32
    %1 = vector.broadcast %cst : f32 to vector<2x1024xf32>
    %2 = arith.mulf %0, %1 : vector<2x1024xf32>
    %cst_1 = arith.constant 5.000000e-01 : f32
    %3 = vector.broadcast %cst_1 : f32 to vector<2x1024xf32>
    %4 = arith.addf %2, %3 : vector<2x1024xf32>
    %5 = math.floor %4 : vector<2x1024xf32>
    %cst_2 = arith.constant 3.906250e-03 : f32
    %6 = vector.broadcast %cst_2 : f32 to vector<2x1024xf32>
    %7 = arith.mulf %5, %6 : vector<2x1024xf32>
    %8 = math.tanh %7 : vector<2x1024xf32>
    %cst_3 = arith.constant 1.280000e+02 : f32
    %9 = vector.broadcast %cst_3 : f32 to vector<2x1024xf32>
    %10 = arith.mulf %8, %9 : vector<2x1024xf32>
    %cst_4 = arith.constant 5.000000e-01 : f32
    %11 = vector.broadcast %cst_4 : f32 to vector<2x1024xf32>
    %12 = arith.addf %10, %11 : vector<2x1024xf32>
    %13 = math.floor %12 : vector<2x1024xf32>
    %cst_5 = arith.constant -1.280000e+02 : f32
    %cst_6 = arith.constant 1.270000e+02 : f32
    %14 = vector.broadcast %cst_5 : f32 to vector<2x1024xf32>
    %15 = arith.maximumf %14, %13 : vector<2x1024xf32>
    %16 = vector.broadcast %cst_6 : f32 to vector<2x1024xf32>
    %17 = arith.minimumf %16, %15 : vector<2x1024xf32>
    %cst_7 = arith.constant 7.812500e-03 : f32
    %18 = vector.broadcast %cst_7 : f32 to vector<2x1024xf32>
    %19 = arith.mulf %17, %18 : vector<2x1024xf32>
    %c0_8 = arith.constant 0 : index
    %c0_9 = arith.constant 0 : index
    %20 = vector.load %arg2[%c0_8, %c0_9] : memref<2x1024xf32, #tpu.memory_space<vmem>>, vector<2x1024xf32>
    tpu.vector_store %arg2[%c0_8, %c0_9], %19 {strides = array<i32>} : memref<2x1024xf32, #tpu.memory_space<vmem>>, vector<2x1024xf32>,
    return
  }
  func.func @transform_0(%arg0: i32) -> (i32, i32) {
    %c0_i32 = arith.constant 0 : i32
    %c0_i32_0 = arith.constant 0 : i32
    return %arg0, %c0_i32 : i32, i32
  }
  func.func @transform_1(%arg0: i32) -> (i32, i32) {
    %c0_i32 = arith.constant 0 : i32
    %c0_i32_0 = arith.constant 0 : i32
    return %arg0, %c0_i32 : i32, i32
  }
}

</mosaic_0001>

<llo_original>
// kernel: tpu_custom_call.1
$region0: #{tpu_custom_call.1}
  #allocation0 [shape = 'u32[]', space=smem, size = 0x4, offset = 0x4, fixed_abs, tag = 'smem constant byte address 0x4 - core index']
  #allocation1 [shape = 'u32[144,128]{1,0:T(1,128)}', space=vmem, size = 0x12000, scoped, tag = 'internal scratch']
  %s0 = inlined_call_operand.hbm [shape: f32[2,1024], index: 0, kind: input, shape index: {}]
  %s1 = inlined_call_operand.hbm [shape: f32[2,1024], index: 1, kind: output, shape index: {}]
  %s2 = sld [smem:[#allocation0]]
  $region18: #{tpu_custom_call.1} parent=0
    _
  %s4 = ssub.s32 1, %s2
  %s5 = scalar_select 0, %s4, %s2
  $region1: #{tpu_custom_call.1} parent=0
    #allocation2 [shape = 'u8[8192]{0}', space=vmem, size = 0x2000, scoped, tag = 'input window, operand 0, single buffered']
    #allocation3 [shape = 's32[1]{0}', space=sflag, size = 0x4, scoped, tag = 'scoped memory for tpu_custom_call.1']
    #allocation4 [shape = 's32[1]{0}', space=sflag, size = 0x4, scoped, tag = 'scoped memory for tpu_custom_call.1']
    #allocation5 [shape = 'u8[8192]{0}', space=vmem, size = 0x2000, scoped, tag = 'output window, operand 0, single buffered']
    %6 = vsyncpa [#allocation3], 0
    %7 = vsyncpa [#allocation4], 0
    // Predicated region
    $region2: #{tpu_custom_call.1} parent=1 // pred_check
      _
    $region3: #{tpu_custom_call.1} parent=1 // pred_check_branch
      %9 = sbr.rel (0) target = $region5
    $region4: #{tpu_custom_call.1} parent=1 // pred_region
      %s11 = ssub.s32 256, 256
      %12 = vsyncadd [#allocation3], %s11
      %s14 = sshll.u32 [#allocation2], 4
      %s15 = int_to_ptr.vmem [resolvable:$true] %s14
      %17 = dma.hbm_to_vmem [thread:$0]  %s0, 256, %s15, [#allocation3]
    $region5: #{tpu_custom_call.1} parent=1 // pred_fallthru
      _
    // Predicated region
    $region6: #{tpu_custom_call.1} parent=1 // pred_check
      _
    $region7: #{tpu_custom_call.1} parent=1 // pred_check_branch
      %19 = sbr.rel (0) target = $region9
    $region8: #{tpu_custom_call.1} parent=1 // pred_region
      %20 = dma.done [#allocation3], 256
    $region9: #{tpu_custom_call.1} parent=1 // pred_fallthru
      _
    %v21 = vld [vmem:[#allocation2] sm:$0xff]
    %v22 = vld [vmem:[#allocation2 + $0x8] sm:$0xff]
    %v23 = vmul.f32 %v21, 256.0
    %v24 = vmul.f32 %v22, 256.0
    %v25 = vadd.f32 %v23, 0.5
    %v26 = vadd.f32 %v24, 0.5
    %v27 = vfloor.f32 %v25
    %v28 = vfloor.f32 %v26
    %v29 = vmul.f32 %v27, 0.00390625
    %v30 = vmul.f32 %v28, 0.00390625
    %v31 = vtanh.pop %v29
    %v32 = vtanh.pop %v30
    %v33 = vmul.f32 %v31, 128.0
    %v34 = vmul.f32 %v32, 128.0
    %v35 = vadd.f32 %v33, 0.5
    %v36 = vadd.f32 %v34, 0.5
    %v37 = vfloor.f32 %v35
    %v38 = vfloor.f32 %v36
    %v39 = vmax.f32 %v37, -128.0
    %v40 = vmax.f32 %v38, -128.0
    %v41 = vmin.f32 %v39, 127.0
    %v42 = vmin.f32 %v40, 127.0
    %v43 = vmul.f32 %v41, 0.0078125
    %v44 = vmul.f32 %v42, 0.0078125
    %45 = vst [vmem:[#allocation5] sm:$0xff] %v43
    %46 = vst [vmem:[#allocation5 + $0x8] sm:$0xff] %v44
    // Predicated region
    $region10: #{tpu_custom_call.1} parent=1 // pred_check
      _
    $region11: #{tpu_custom_call.1} parent=1 // pred_check_branch
      %48 = sbr.rel (0) target = $region13
    $region12: #{tpu_custom_call.1} parent=1 // pred_region
      %s50 = ssub.s32 256, 256
      %51 = vsyncadd [#allocation4], %s50
      %s53 = sshll.u32 [#allocation5], 4
      %s54 = int_to_ptr.vmem [resolvable:$true] %s53
      %56 = dma.vmem_to_hbm [thread:$0]  %s54, 256, %s1, [#allocation4]
    $region13: #{tpu_custom_call.1} parent=1 // pred_fallthru
      _
    // Predicated region
    $region14: #{tpu_custom_call.1} parent=1 // pred_check
      _
    $region15: #{tpu_custom_call.1} parent=1 // pred_check_branch
      %58 = sbr.rel (0) target = $region17
    $region16: #{tpu_custom_call.1} parent=1 // pred_region
      %59 = dma.done [#allocation4], 256
    $region17: #{tpu_custom_call.1} parent=1 // pred_fallthru
      _
    %60 = vsyncpa [#allocation3], 1
    %61 = vsyncpa [#allocation4], 1

</llo_original>
